<compile_context>
chip_gen: v5e
topology: v5e:2x2
jax: 0.10.0
libtpu: 0.0.40
codegen_flags: <defaults>
</compile_context>

<pallas_src>
import functools
import math

import jax
import jax.numpy as jnp
from jax import lax
from jax.experimental import pallas as pl
from jax.experimental.pallas import tpu as pltpu


# ------------------------------ helpers --------------------------------------
def _pick_tile(dim, target, align):
    """Largest tile <= target that divides `dim` and is a multiple of `align`;
    falls back to the full dim (always legal as a BlockSpec)."""
    if dim <= target:
        return dim
    t = (target // align) * align
    while t >= align:
        if dim % t == 0:
            return t
        t -= align
    return dim


# ----------------------------- linear kernel ----------------------------------
def _linear_kernel(x_ref, w_ref, b_ref, o_ref, acc_ref, *, compute_dtype):
    k = pl.program_id(2)

    @pl.when(k == 0)
    def _():
        acc_ref[...] = jnp.zeros_like(acc_ref)

    acc_ref[...] += jnp.dot(
        x_ref[...].astype(compute_dtype),
        w_ref[...].astype(compute_dtype),
        preferred_element_type=jnp.float32,
    )

    @pl.when(k == pl.num_programs(2) - 1)
    def _():
        o_ref[...] = (acc_ref[...] + b_ref[...].astype(jnp.float32)).astype(o_ref.dtype)


def linear(x, w_t, b, *, tm=256, tn=256, tk=512, compute_dtype=jnp.float32):
    """x: (M, K); w_t: (K, N) pre-transposed; b: (N,)  ->  (M, N)."""
    m, kdim = x.shape
    n = w_t.shape[1]
    tm = _pick_tile(m, tm, 8)        # sublane-aligned row tile
    tn = _pick_tile(n, tn, 128)      # lane-aligned output tile
    tk = _pick_tile(kdim, tk, 128)   # lane-aligned contraction tile
    grid = (m // tm, n // tn, kdim // tk)
    b2 = b.reshape(1, n)

    kernel = functools.partial(_linear_kernel, compute_dtype=compute_dtype)
    return pl.pallas_call(
        kernel,
        out_shape=jax.ShapeDtypeStruct((m, n), x.dtype),
        grid_spec=pltpu.PrefetchScalarGridSpec(
            num_scalar_prefetch=0,
            grid=grid,
            in_specs=[
                pl.BlockSpec((tm, tk), lambda i, j, k: (i, k)),
                pl.BlockSpec((tk, tn), lambda i, j, k: (k, j)),
                pl.BlockSpec((1, tn), lambda i, j, k: (0, j)),
            ],
            out_specs=pl.BlockSpec((tm, tn), lambda i, j, k: (i, j)),
            scratch_shapes=[pltpu.VMEM((tm, tn), jnp.float32)],
        ),
        compiler_params=pltpu.CompilerParams(
            dimension_semantics=("parallel", "parallel", "arbitrary"),
        ),
    )(x, w_t, b2)


# -------------------- attention + output-projection kernel --------------------
def _attn_kernel(q_ref, k_ref, v_ref, wo_ref, bo_ref, o_ref,
                 m_sc, l_sc, acc_sc, *, heads, scale, compute_dtype):
    kv = pl.program_id(2)

    @pl.when(kv == 0)
    def _():
        m_sc[...] = jnp.full_like(m_sc, -jnp.inf)
        l_sc[...] = jnp.zeros_like(l_sc)
        acc_sc[...] = jnp.zeros_like(acc_sc)

    # lane-dense (tq, D) / (tkv, D) slabs; 1/sqrt(dk) folded into q once per step
    q = q_ref[0].astype(jnp.float32) * scale
    k = k_ref[0]
    v = v_ref[0]
    dk = q.shape[-1] // heads

    for h in range(heads):                       # static unroll over heads
        lo = h * dk
        qh = q[:, lo:lo + dk].astype(compute_dtype)
        kh = k[:, lo:lo + dk].astype(compute_dtype)
        vh = v[:, lo:lo + dk].astype(compute_dtype)

        # contract last axes of both operands (no kh.T relayout)
        s = lax.dot_general(qh, kh, (((1,), (1,)), ((), ())),
                            preferred_element_type=jnp.float32)   # (tq, tkv)

        m_prev = m_sc[:, h:h + 1]
        m_new = jnp.maximum(m_prev, jnp.max(s, axis=-1, keepdims=True))
        alpha = jnp.exp(m_prev - m_new)
        p = jnp.exp(s - m_new)
        l_sc[:, h:h + 1] = alpha * l_sc[:, h:h + 1] + jnp.sum(p, axis=-1, keepdims=True)
        acc_sc[:, lo:lo + dk] = alpha * acc_sc[:, lo:lo + dk] + jnp.dot(
            p.astype(compute_dtype), vh, preferred_element_type=jnp.float32)
        m_sc[:, h:h + 1] = m_new

    @pl.when(kv == pl.num_programs(2) - 1)
    def _():
        # normalize per head inside the f32 scratch ...
        for h in range(heads):
            lo = h * dk
            acc_sc[:, lo:lo + dk] = acc_sc[:, lo:lo + dk] / l_sc[:, h:h + 1]
        # ... then fused output projection: one MXU GEMM and a single
        # lane-dense (tq, D) store; ctx never touches HBM.
        ctx = acc_sc[...].astype(compute_dtype)
        out = jnp.dot(ctx, wo_ref[...].astype(compute_dtype),
                      preferred_element_type=jnp.float32)
        o_ref[0] = (out + bo_ref[...].astype(jnp.float32)).astype(o_ref.dtype)


def attention_out(qp, kp, vp, wo_t, bo, heads, *, tq=256, tkv=512,
                  compute_dtype=jnp.float32):
    """qp/kp/vp: (B, S, D) with heads interleaved along D; wo_t: (D, D)
    pre-transposed out-projection; bo: (D,)  ->  (B, Sq, D) projected output."""
    B, Sq, D = qp.shape
    Skv = kp.shape[1]
    dk = D // heads
    tq = _pick_tile(Sq, tq, 8)
    tkv = _pick_tile(Skv, tkv, 8)
    grid = (B, Sq // tq, Skv // tkv)
    bo2 = bo.reshape(1, D)

    kernel = functools.partial(_attn_kernel, heads=heads,
                               scale=1.0 / math.sqrt(dk),
                               compute_dtype=compute_dtype)
    return pl.pallas_call(
        kernel,
        out_shape=jax.ShapeDtypeStruct((B, Sq, D), qp.dtype),
        grid_spec=pltpu.PrefetchScalarGridSpec(
            num_scalar_prefetch=0,
            grid=grid,
            in_specs=[
                pl.BlockSpec((1, tq, D), lambda b, qi, ki: (b, qi, 0)),
                pl.BlockSpec((1, tkv, D), lambda b, qi, ki: (b, ki, 0)),
                pl.BlockSpec((1, tkv, D), lambda b, qi, ki: (b, ki, 0)),
                # out-projection weight/bias: constant index_map -> resident in VMEM
                pl.BlockSpec((D, D), lambda b, qi, ki: (0, 0)),
                pl.BlockSpec((1, D), lambda b, qi, ki: (0, 0)),
            ],
            out_specs=pl.BlockSpec((1, tq, D), lambda b, qi, ki: (b, qi, 0)),
            scratch_shapes=[
                pltpu.VMEM((tq, heads), jnp.float32),   # running max per head
                pltpu.VMEM((tq, heads), jnp.float32),   # running denom per head
                pltpu.VMEM((tq, D), jnp.float32),       # f32 context accumulator
            ],
        ),
        compiler_params=pltpu.CompilerParams(
            dimension_semantics=("parallel", "parallel", "arbitrary"),
        ),
    )(qp, kp, vp, wo_t, bo2)


# ----------------------------- module wrapper ---------------------------------
def multi_head_attention(q, k, v, params, heads, *, tq=256, tkv=512,
                         compute_dtype=jnp.float32):
    """Mirror of MultiHeadAttention.forward (returns `output`)."""
    # TODO(synk): eval-mode caching of self.heads / self.scores (module attribute
    # side effects) is not reproduced; only the forward output is computed.
    B, Sq, D = q.shape
    Skv = k.shape[1]

    qp = linear(q.reshape(B * Sq, D), params["wq_t"], params["bq"],
                compute_dtype=compute_dtype).reshape(B, Sq, D)
    kp = linear(k.reshape(B * Skv, D), params["wk_t"], params["bk"],
                compute_dtype=compute_dtype).reshape(B, Skv, D)
    vp = linear(v.reshape(B * Skv, D), params["wv_t"], params["bv"],
                compute_dtype=compute_dtype).reshape(B, Skv, D)

    # flash attention with the output projection fused into its finalize step;
    # activations never leave the lane-dense (B, S, D) layout.
    return attention_out(qp, kp, vp, params["wo_t"], params["bo"], heads,
                         tq=tq, tkv=tkv, compute_dtype=compute_dtype)


# ----------------------------- parameter init ---------------------------------
def init_params(key, d_model):
    kq, kk, kv, ko = jax.random.split(key, 4)
    limit = math.sqrt(6.0 / (d_model + d_model))   # glorot uniform for q/k/v
    std = math.sqrt(1.0 / d_model)                 # lecun normal for out
    wq = jax.random.uniform(kq, (d_model, d_model), jnp.float32, -limit, limit)
    wk = jax.random.uniform(kk, (d_model, d_model), jnp.float32, -limit, limit)
    wv = jax.random.uniform(kv, (d_model, d_model), jnp.float32, -limit, limit)
    wo = std * jax.random.normal(ko, (d_model, d_model), jnp.float32)
    zeros = jnp.zeros((d_model,), jnp.float32)
    return {
        # weights pre-transposed once at init -> kernels contract (M,K)x(K,N)
        "wq_t": wq.T, "bq": zeros,
        "wk_t": wk.T, "bk": zeros,
        "wv_t": wv.T, "bv": zeros,
        "wo_t": wo.T, "bo": zeros,
        # torch-layout copies kept only for the pure-JAX reference
        "wq": wq, "wk": wk, "wv": wv, "wo": wo,
    }


# ------------------------------ reference -------------------------------------
def reference(q, k, v, params, heads):
    B, S, D = q.shape
    dk = D // heads

    def lin(x, w, b):
        return x @ w.T + b

    def split(x):
        return jnp.transpose(x.reshape(B, -1, heads, dk), (0, 2, 1, 3))

    qh = split(lin(q, params["wq"], params["bq"]))
    kh = split(lin(k, params["wk"], params["bk"]))
    vh = split(lin(v, params["wv"], params["bv"]))
    s = jnp.einsum("bhqd,bhkd->bhqk", qh, kh) / math.sqrt(dk)
    p = jax.nn.softmax(s, axis=-1)
    ctx = jnp.einsum("bhqk,bhkd->bhqd", p, vh)
    concat = jnp.transpose(ctx, (0, 2, 1, 3)).reshape(B, -1, D)
    return lin(concat, params["wo"], params["bo"])


# --------------------------------- main ----------------------------------------
if __name__ == "__main__":
    B, S, D, H = 2, 8, 32, 4
    key = jax.random.PRNGKey(0)
    k_par, k_q, k_k, k_v = jax.random.split(key, 4)
    params = init_params(k_par, D)
    q = jax.random.normal(k_q, (B, S, D), jnp.float32)
    k = jax.random.normal(k_k, (B, S, D), jnp.float32)
    v = jax.random.normal(k_v, (B, S, D), jnp.float32)

    out = jax.block_until_ready(multi_head_attention(q, k, v, params, H))
    ref = reference(q, k, v, params, H)
    assert out.shape == (B, S, D)
    assert jnp.allclose(out, ref, atol=2e-4, rtol=2e-4), "mismatch vs reference (module)"

    # second check: force multi-step online-softmax (KV tiling) and Q tiling
    S2 = 16
    kq2, kk2, kv2 = jax.random.split(jax.random.PRNGKey(1), 3)
    q2 = jax.random.normal(kq2, (B, S2, D), jnp.float32)
    k2 = jax.random.normal(kk2, (B, S2, D), jnp.float32)
    v2 = jax.random.normal(kv2, (B, S2, D), jnp.float32)
    out2 = jax.block_until_ready(
        multi_head_attention(q2, k2, v2, params, H, tq=8, tkv=8))
    ref2 = reference(q2, k2, v2, params, H)
    assert jnp.allclose(out2, ref2, atol=2e-4, rtol=2e-4), \
        "mismatch vs reference (flash tiling)"

    print("KERNEL_OK")
</pallas_src>

<mosaic_0001>
module attributes {stable_mosaic.version = 11 : i64} {
  func.func @_linear_kernel(%arg0: i32, %arg1: i32, %arg2: i32, %arg3: memref<16x32xf32, #tpu.memory_space<vmem>>, %arg4: memref<32x32xf32, #tpu.memory_space<vmem>>, %arg5: memref<1x32xf32, #tpu.memory_space<vmem>>, %arg6: memref<16x32xf32, #tpu.memory_space<vmem>>, %arg7: memref<16x32xf32, #tpu.memory_space<vmem>>) attributes {dimension_semantics = [#tpu.dimension_semantics<parallel>, #tpu.dimension_semantics<parallel>, #tpu.dimension_semantics<arbitrary>], iteration_bounds = array<i64: 1, 1, 1>, scalar_prefetch = 0 : i64, scratch_operands = 1 : i64, tpu.core_type = #tpu.core_type<tc>, window_params = [{transform_indices = @transform_0, window_bounds = array<i64: 16, 32>}, {transform_indices = @transform_1, window_bounds = array<i64: 32, 32>}, {transform_indices = @transform_2, window_bounds = array<i64: 1, 32>}, {transform_indices = @transform_3, window_bounds = array<i64: 16, 32>}]} {
    %c0_i32 = arith.constant 0 : i32
    %0 = arith.cmpi eq, %arg2, %c0_i32 : i32
    %1 = arith.extui %0 : i1 to i32
    %c0_i32_0 = arith.constant 0 : i32
    %2 = arith.cmpi ne, %1, %c0_i32_0 : i32
    scf.if %2 {
      %cst_10 = arith.constant 0.000000e+00 : f32
      %12 = vector.broadcast %cst_10 : f32 to vector<16x32xf32>
      %c0_11 = arith.constant 0 : index
      %c0_12 = arith.constant 0 : index
      %13 = vector.load %arg7[%c0_11, %c0_12] : memref<16x32xf32, #tpu.memory_space<vmem>>, vector<16x32xf32>
      tpu.vector_store %arg7[%c0_11, %c0_12], %12 {strides = array<i32>} : memref<16x32xf32, #tpu.memory_space<vmem>>, vector<16x32xf32>,
    } else {
    }
    %c0 = arith.constant 0 : index
    %c0_1 = arith.constant 0 : index
    %3 = vector.load %arg7[%c0, %c0_1] : memref<16x32xf32, #tpu.memory_space<vmem>>, vector<16x32xf32>
    %c0_2 = arith.constant 0 : index
    %c0_3 = arith.constant 0 : index
    %4 = vector.load %arg3[%c0_2, %c0_3] : memref<16x32xf32, #tpu.memory_space<vmem>>, vector<16x32xf32>
    %c0_4 = arith.constant 0 : index
    %c0_5 = arith.constant 0 : index
    %5 = vector.load %arg4[%c0_4, %c0_5] : memref<32x32xf32, #tpu.memory_space<vmem>>, vector<32x32xf32>
    %cst = arith.constant dense<0.000000e+00> : vector<16x32xf32>
    %6 = tpu.matmul %4, %5, %cst {dimension_numbers = #tpu.dot_dimension_numbers<[1], [0], [0], [1], [0, 0, 1, 1], [], []>} : vector<16x32xf32>, vector<32x32xf32>, vector<16x32xf32> -> vector<16x32xf32>
    %7 = arith.addf %3, %6 : vector<16x32xf32>
    %c0_6 = arith.constant 0 : index
    %c0_7 = arith.constant 0 : index
    %8 = vector.load %arg7[%c0_6, %c0_7] : memref<16x32xf32, #tpu.memory_space<vmem>>, vector<16x32xf32>
    tpu.vector_store %arg7[%c0_6, %c0_7], %7 {strides = array<i32>} : memref<16x32xf32, #tpu.memory_space<vmem>>, vector<16x32xf32>,
    %c0_i32_8 = arith.constant 0 : i32
    %9 = arith.cmpi eq, %arg2, %c0_i32_8 : i32
    %10 = arith.extui %9 : i1 to i32
    %c0_i32_9 = arith.constant 0 : i32
    %11 = arith.cmpi ne, %10, %c0_i32_9 : i32
    scf.if %11 {
      %c0_10 = arith.constant 0 : index
      %c0_11 = arith.constant 0 : index
      %12 = vector.load %arg7[%c0_10, %c0_11] : memref<16x32xf32, #tpu.memory_space<vmem>>, vector<16x32xf32>
      %c0_12 = arith.constant 0 : index
      %c0_13 = arith.constant 0 : index
      %13 = vector.load %arg5[%c0_12, %c0_13] : memref<1x32xf32, #tpu.memory_space<vmem>>, vector<1x32xf32>
      %14 = vector.broadcast %13 : vector<1x32xf32> to vector<16x32xf32>
      %15 = arith.addf %12, %14 : vector<16x32xf32>
      %c0_14 = arith.constant 0 : index
      %c0_15 = arith.constant 0 : index
      %16 = vector.load %arg6[%c0_14, %c0_15] : memref<16x32xf32, #tpu.memory_space<vmem>>, vector<16x32xf32>
      tpu.vector_store %arg6[%c0_14, %c0_15], %15 {strides = array<i32>} : memref<16x32xf32, #tpu.memory_space<vmem>>, vector<16x32xf32>,
    } else {
    }
    return
  }
  func.func @transform_0(%arg0: i32, %arg1: i32, %arg2: i32) -> (i32, i32) {
    %c0_i32 = arith.constant 0 : i32
    return %arg0, %arg2 : i32, i32
  }
  func.func @transform_1(%arg0: i32, %arg1: i32, %arg2: i32) -> (i32, i32) {
    %c0_i32 = arith.constant 0 : i32
    return %arg2, %arg1 : i32, i32
  }
  func.func @transform_2(%arg0: i32, %arg1: i32, %arg2: i32) -> (i32, i32) {
    %c0_i32 = arith.constant 0 : i32
    %c0_i32_0 = arith.constant 0 : i32
    return %c0_i32, %arg1 : i32, i32
  }
  func.func @transform_3(%arg0: i32, %arg1: i32, %arg2: i32) -> (i32, i32) {
    %c0_i32 = arith.constant 0 : i32
    return %arg0, %arg1 : i32, i32
  }
}

</mosaic_0001>

<llo_original>
// kernel: tpu_custom_call.1
$region0: #{tpu_custom_call.1}
  #allocation0 [shape = 'u32[]', space=smem, size = 0x4, offset = 0x4, fixed_abs, tag = 'smem constant byte address 0x4 - core index']
  #allocation1 [shape = 'u32[72,128]{1,0:T(1,128)}', space=vmem, size = 0x9000, scoped, tag = 'internal scratch']
  #allocation2 [shape = 'f32[16,32]{1,0:T(8,128)}', space=vmem, size = 0x2000, scoped, tag = 'scratch operand']
  %s0 = inlined_call_operand.hbm [shape: f32[16,32], index: 0, kind: input, shape index: {}]
  %s1 = inlined_call_operand.hbm [shape: f32[32,32], index: 1, kind: input, shape index: {}]
  %s2 = inlined_call_operand.vmem [shape: f32[1,32], index: 2, kind: input, shape index: {}]
  %s3 = inlined_call_operand.hbm [shape: f32[16,32], index: 3, kind: output, shape index: {}]
  %s4 = sld [smem:[#allocation0]]
  $region38: #{tpu_custom_call.1} parent=0
    _
  %s6 = ssub.s32 1, %s4
  %s7 = scalar_select 0, %s6, %s4
  $region1: #{tpu_custom_call.1} parent=0
    #allocation3 [shape = 'u8[8192]{0}', space=vmem, size = 0x2000, scoped, tag = 'input window, operand 0, single buffered']
    #allocation4 [shape = 's32[1]{0}', space=sflag, size = 0x4, scoped, tag = 'scoped memory for tpu_custom_call.1']
    #allocation5 [shape = 's32[1]{0}', space=sflag, size = 0x4, scoped, tag = 'scoped memory for tpu_custom_call.1']
    #allocation6 [shape = 'u8[16384]{0}', space=vmem, size = 0x4000, scoped, tag = 'input window, operand 1, single buffered']
    #allocation7 [shape = 's32[1]{0}', space=sflag, size = 0x4, scoped, tag = 'scoped memory for tpu_custom_call.1']
    #allocation8 [shape = 'u8[8192]{0}', space=vmem, size = 0x2000, scoped, tag = 'output window, operand 0, single buffered']
    %8 = vsyncpa [#allocation4], 0
    %9 = vsyncpa [#allocation7], 0
    %10 = vsyncpa [#allocation5], 0
    // Predicated region
    $region2: #{tpu_custom_call.1} parent=1 // pred_check
      _
    $region3: #{tpu_custom_call.1} parent=1 // pred_check_branch
      %12 = sbr.rel (0) target = $region5
    $region4: #{tpu_custom_call.1} parent=1 // pred_region
      %14 = vsyncadd [#allocation4], 0
      %s15 = sshll.u32 %s0, 4
      %s16 = int_to_ptr.hbm [resolvable:$true] %s15
      %s17 = sshll.u32 [#allocation3], 4
      %s18 = int_to_ptr.vmem [resolvable:$true] %s17
      %23 = dma.hbm_to_vmem [thread:$0]  %s16, 256, %s18, [#allocation4], 128, 128, 8
    $region5: #{tpu_custom_call.1} parent=1 // pred_fallthru
      _
    // Predicated region
    $region6: #{tpu_custom_call.1} parent=1 // pred_check
      _
    $region7: #{tpu_custom_call.1} parent=1 // pred_check_branch
      %25 = sbr.rel (0) target = $region9
    $region8: #{tpu_custom_call.1} parent=1 // pred_region
      %27 = vsyncadd [#allocation7], 0
      %s28 = sshll.u32 %s1, 4
      %s29 = int_to_ptr.hbm [resolvable:$true] %s28
      %s30 = sshll.u32 [#allocation6], 4
      %s31 = int_to_ptr.vmem [resolvable:$true] %s30
      %36 = dma.hbm_to_vmem [thread:$0]  %s29, 512, %s31, [#allocation7], 128, 128, 8
    $region9: #{tpu_custom_call.1} parent=1 // pred_fallthru
      _
    // Predicated region
    $region10: #{tpu_custom_call.1} parent=1 // pred_check
      _
    $region11: #{tpu_custom_call.1} parent=1 // pred_check_branch
      %38 = sbr.rel (0) target = $region13
    $region12: #{tpu_custom_call.1} parent=1 // pred_region
      _
    $region13: #{tpu_custom_call.1} parent=1 // pred_fallthru
      _
    // Predicated region
    $region14: #{tpu_custom_call.1} parent=1 // pred_check
      _
    $region15: #{tpu_custom_call.1} parent=1 // pred_check_branch
      %40 = sbr.rel (0) target = $region17
    $region16: #{tpu_custom_call.1} parent=1 // pred_region
      %42 = dma.done [#allocation4], 256
    $region17: #{tpu_custom_call.1} parent=1 // pred_fallthru
      _
    // Predicated region
    $region18: #{tpu_custom_call.1} parent=1 // pred_check
      _
    $region19: #{tpu_custom_call.1} parent=1 // pred_check_branch
      %44 = sbr.rel (0) target = $region21
    $region20: #{tpu_custom_call.1} parent=1 // pred_region
      %46 = dma.done [#allocation7], 512
    $region21: #{tpu_custom_call.1} parent=1 // pred_fallthru
      _
    %p47 = scmp.eq.s32.totalorder 0, 0
    // Predicated region
    $region22: #{tpu_custom_call.1} parent=1 // pred_check
      %p48 = pneg %p47
    $region23: #{tpu_custom_call.1} parent=1 // pred_check_branch
      %50 = sbr.rel (%p48) target = $region25
    $region24: #{tpu_custom_call.1} parent=1 // pred_region
      %vm51 = vcmask 261120
      %52 = vst.msk [vmem:[#allocation2] sm:$0xff] %vm51, 0.0
      %53 = vst.msk [vmem:[#allocation2 + $0x8] sm:$0xff] %vm51, 0.0
    $region25: #{tpu_custom_call.1} parent=1 // pred_fallthru
      _
    %v54 = vld [vmem:[#allocation2] sm:$0xff]
    %v55 = vld [vmem:[#allocation2 + $0x8] sm:$0xff]
    %v56 = vld [vmem:[#allocation3] sm:$0xff]
    %v57 = vld [vmem:[#allocation3 + $0x8] sm:$0xff]
    %v58 = vld [vmem:[#allocation6] sm:$0xff]
    %v59 = vld [vmem:[#allocation6 + $0x8] sm:$0xff]
    %v60 = vld [vmem:[#allocation6 + $0x10] sm:$0xff]
    %v61 = vld [vmem:[#allocation6 + $0x18] sm:$0xff]
    %vm62 = vcmask 261120
    %v64 = vsel %vm62, %v56, 0
    %v67 = vsel %vm62, %v57, 0
    %69 = vmatpush.msra.mxu0 0.0
    %70 = vmatpush.msra.mxu0 0.0
    %71 = vmatpush.msra.mxu0 0.0
    %72 = vmatpush.msra.mxu0 0.0
    %73 = vmatpush.msra.mxu0 0.0
    %74 = vmatpush.msra.mxu0 0.0
    %75 = vmatpush.msra.mxu0 0.0
    %76 = vmatpush.msra.mxu0 0.0
    %77 = vmatpush.msra.mxu0 0.0
    %78 = vmatpush.msra.mxu0 0.0
    %79 = vmatpush.msra.mxu0 0.0
    %80 = vmatpush.msra.mxu0 0.0
    %81 = vmatpush.msra.mxu0 %v61
    %82 = vmatpush.msra.mxu0 %v60
    %83 = vmatpush.msra.mxu0 %v59
    %84 = vmatpush.msra.mxu0 %v58
    %85 = vmatmul.f32.gmra.mxu0 %v64
    %v86 = vpop.f32.mrf.mxu0
    %v87 = vadd.f32 0.0, %v86
    %88 = vmatmul.f32.gmra.mxu0 %v67
    %v89 = vpop.f32.mrf.mxu0
    %v90 = vadd.f32 0.0, %v89
    %91 = vdwg.mxu0
    %v92 = vadd.f32 %v54, %v87
    %v93 = vadd.f32 %v55, %v90
    %94 = vst.msk [vmem:[#allocation2] sm:$0xff] %vm62, %v92
    %95 = vst.msk [vmem:[#allocation2 + $0x8] sm:$0xff] %vm62, %v93
    // Predicated region
    $region26: #{tpu_custom_call.1} parent=1 // pred_check
      %p96 = pneg %p47
    $region27: #{tpu_custom_call.1} parent=1 // pred_check_branch
      %98 = sbr.rel (%p96) target = $region29
    $region28: #{tpu_custom_call.1} parent=1 // pred_region
      %v99 = vld [vmem:[#allocation2] sm:$0xff]
      %v100 = vld [vmem:[#allocation2 + $0x8] sm:$0xff]
      %v101 = vld [vmem:[%s2] sm:$0x1]
      %v103 = vperm.slane %v101, 0
      %v105 = vadd.f32 %v99, %v103
      %v106 = vadd.f32 %v100, %v103
      %107 = vst.msk [vmem:[#allocation8] sm:$0xff] %vm62, %v105
      %108 = vst.msk [vmem:[#allocation8 + $0x8] sm:$0xff] %vm62, %v106
    $region29: #{tpu_custom_call.1} parent=1 // pred_fallthru
      _
    // Predicated region
    $region30: #{tpu_custom_call.1} parent=1 // pred_check
      _
    $region31: #{tpu_custom_call.1} parent=1 // pred_check_branch
      %110 = sbr.rel (0) target = $region33
    $region32: #{tpu_custom_call.1} parent=1 // pred_region
      %112 = vsyncadd [#allocation5], 0
      %s113 = sshll.u32 [#allocation8], 4
      %s114 = int_to_ptr.vmem [resolvable:$true] %s113
      %s115 = sshll.u32 %s3, 4
      %s116 = int_to_ptr.hbm [resolvable:$true] %s115
      %121 = dma.vmem_to_hbm [thread:$0]  %s114, 256, %s116, [#allocation5], 128, 128, 8
    $region33: #{tpu_custom_call.1} parent=1 // pred_fallthru
      _
    // Predicated region
    $region34: #{tpu_custom_call.1} parent=1 // pred_check
      _
    $region35: #{tpu_custom_call.1} parent=1 // pred_check_branch
      %123 = sbr.rel (0) target = $region37
    $region36: #{tpu_custom_call.1} parent=1 // pred_region
      %125 = dma.done [#allocation5], 256
    $region37: #{tpu_custom_call.1} parent=1 // pred_fallthru
      _
    %126 = vsyncpa [#allocation4], 1
    %127 = vsyncpa [#allocation7], 1
    %128 = vsyncpa [#allocation5], 1

</llo_original>
